<compile_context>
chip_gen: v7x
topology: tpu7x:2x2x1
jax: 0.10.0
libtpu: 0.0.40
codegen_flags: <defaults>
</compile_context>

<pallas_src>
import functools

import jax
import jax.numpy as jnp
from jax.experimental import pallas as pl
from jax.experimental.pallas import tpu as pltpu


def _attn_kernel(x_ref, wqkv_ref, wo_ref, bias_ref, o_ref, *, num_heads, dk, dv):
    # x_ref:    [B, L, H]
    # wqkv_ref: [H, 2*kd + vd]   columns = [Wq*scale | Wk | Wv], head-major inside each
    # wo_ref:   [vd, H]
    # bias_ref: [B*L, B*L]       block-diagonal causal additive bias (0 / -1e9)
    # o_ref:    [B, L, H]
    B, L, H = x_ref.shape
    N = B * L
    kd = num_heads * dk

    # --- fused QKV projection: one fat 2D matmul, f32 accumulation ---
    x2 = x_ref[...].reshape(N, H)                                     # [N, H]
    qkv = jnp.dot(x2, wqkv_ref[...],
                  preferred_element_type=jnp.float32)                 # [N, 2kd+vd]

    # --- head split via static lane slices -> [h, N, d] (leading batch dim) ---
    q3 = jnp.stack([qkv[:, i * dk:(i + 1) * dk]
                    for i in range(num_heads)], axis=0)               # [h, N, dk]
    k3 = jnp.stack([qkv[:, kd + i * dk: kd + (i + 1) * dk]
                    for i in range(num_heads)], axis=0)               # [h, N, dk]
    v3 = jnp.stack([qkv[:, 2 * kd + i * dv: 2 * kd + (i + 1) * dv]
                    for i in range(num_heads)], axis=0)               # [h, N, dv]

    # --- head-batched scores over the folded (batch*length) axis ---
    logits = jnp.einsum('hqd,hkd->hqk', q3, k3,
                        preferred_element_type=jnp.float32)           # [h, N, N]
    logits = logits + bias_ref[...][None]                             # mask: causal + same-batch

    # --- softmax over keys (f32); divide goes to the EUP via approx reciprocal ---
    m = jnp.max(logits, axis=-1, keepdims=True)
    e = jnp.exp(logits - m)
    s = jnp.sum(e, axis=-1, keepdims=True)
    p = e * pl.reciprocal(s, approx=True)                             # [h, N, N]

    # --- head-batched PV product ---
    ctx = jnp.einsum('hqk,hkd->hqd', p, v3,
                     preferred_element_type=jnp.float32)              # [h, N, dv]

    # --- concat heads along features, single fat output projection ---
    ctx2 = jnp.concatenate([ctx[i] for i in range(num_heads)], axis=-1)  # [N, vd]
    out = jnp.dot(ctx2, wo_ref[...],
                  preferred_element_type=jnp.float32)                 # [N, H]
    o_ref[...] = out.reshape(B, L, H).astype(o_ref.dtype)


def attn_forward(x, wq, wk, wv, wo, *, num_heads):
    """Fused global (causal) multi-head attention forward.

    x:  [B, L, H]
    wq, wk: [H, kd]   wv: [H, vd]   wo: [vd, H]   (PyTorch Linear weights, transposed)
    """
    B, L, H = x.shape
    kd = wq.shape[1]
    vd = wv.shape[1]
    dk = kd // num_heads
    dv = vd // num_heads
    N = B * L
    qkv_m = 2 * kd + vd

    # One-time weight packing: q-scale folded into Wq columns; single [H, 96] slab.
    scale = float(dk) ** -0.5
    wqkv = jnp.concatenate([wq * scale, wk, wv], axis=1)               # [H, 2kd+vd]

    # Block-diagonal causal additive bias over the folded (batch*length) axis.
    qi = jnp.arange(N)[:, None]
    ki = jnp.arange(N)[None, :]
    allowed = (ki <= qi) & ((qi // L) == (ki // L))
    bias = jnp.where(allowed, 0.0, -1e9).astype(jnp.float32)           # [N, N]

    kernel = functools.partial(_attn_kernel, num_heads=num_heads, dk=dk, dv=dv)

    return pl.pallas_call(
        kernel,
        out_shape=jax.ShapeDtypeStruct((B, L, H), x.dtype),
        grid_spec=pltpu.PrefetchScalarGridSpec(
            num_scalar_prefetch=0,
            grid=(1,),  # whole batch in one step; no serial pipeline overhead
            in_specs=[
                pl.BlockSpec((B, L, H), lambda i: (0, 0, 0)),
                pl.BlockSpec((H, qkv_m), lambda i: (0, 0)),
                pl.BlockSpec((vd, H), lambda i: (0, 0)),
                pl.BlockSpec((N, N), lambda i: (0, 0)),
            ],
            out_specs=pl.BlockSpec((B, L, H), lambda i: (0, 0, 0)),
        ),
        compiler_params=pltpu.CompilerParams(
            dimension_semantics=("arbitrary",)),
    )(x, wqkv, wo, bias)


def attn_reference(x, wq, wk, wv, wo, *, num_heads):
    """Pure-JAX replica of the PyTorch forward (attn_type='global')."""
    B, L, H = x.shape
    kd, vd = wq.shape[1], wv.shape[1]
    dk, dv = kd // num_heads, vd // num_heads

    q = x @ wq
    k = x @ wk
    v = x @ wv
    q = q.reshape(B, L, num_heads, dk).transpose(0, 2, 1, 3) * (dk ** -0.5)
    k = k.reshape(B, L, num_heads, dk).transpose(0, 2, 1, 3)
    v = v.reshape(B, L, num_heads, dv).transpose(0, 2, 1, 3)

    logits = jnp.einsum('bhqd,bhkd->bhqk', q, k)
    bias = -1e9 * jnp.triu(jnp.ones((L, L), jnp.float32), 1)
    weights = jax.nn.softmax(logits + bias, axis=-1)
    out = jnp.einsum('bhqk,bhkd->bhqd', weights, v)
    out = out.transpose(0, 2, 1, 3).reshape(B, L, vd)
    return out @ wo


if __name__ == "__main__":
    # hparams: hidden_size=32, num_heads=4, total_key_depth=None -> kd=vd=32,
    #          attn_type='global'
    B, L, H = 2, 8, 32
    num_heads = 4
    kd = vd = H

    key = jax.random.PRNGKey(0)
    kx, kq, kk, kv, ko = jax.random.split(key, 5)
    x = jax.random.normal(kx, (B, L, H), jnp.float32)
    wq = jax.random.normal(kq, (H, kd), jnp.float32) * 0.1
    wk = jax.random.normal(kk, (H, kd), jnp.float32) * 0.1
    wv = jax.random.normal(kv, (H, vd), jnp.float32) * 0.1
    wo = jax.random.normal(ko, (vd, H), jnp.float32) * 0.1

    ref = attn_reference(x, wq, wk, wv, wo, num_heads=num_heads)

    out = attn_forward(x, wq, wk, wv, wo, num_heads=num_heads)
    out = jax.block_until_ready(out)
    assert out.shape == (B, L, H)
    assert jnp.allclose(out, ref, atol=2e-3, rtol=2e-3), "kernel mismatch vs reference"

    print("KERNEL_OK")
</pallas_src>

<mosaic_0001>
module attributes {stable_mosaic.version = 11 : i64} {
  func.func @_attn_kernel(%arg0: i32, %arg1: memref<2x8x32xf32, #tpu.memory_space<vmem>>, %arg2: memref<32x96xf32, #tpu.memory_space<vmem>>, %arg3: memref<32x32xf32, #tpu.memory_space<vmem>>, %arg4: memref<16x16xf32, #tpu.memory_space<vmem>>, %arg5: memref<2x8x32xf32, #tpu.memory_space<vmem>>) attributes {dimension_semantics = [#tpu.dimension_semantics<arbitrary>], iteration_bounds = array<i64: 1>, scalar_prefetch = 0 : i64, scratch_operands = 0 : i64, tpu.core_type = #tpu.core_type<tc>, window_params = [{pipeline_mode = #tpu.pipeline_mode<synchronous>, transform_indices = @transform_0, window_bounds = array<i64: 2, 8, 32>}, {pipeline_mode = #tpu.pipeline_mode<synchronous>, transform_indices = @transform_1, window_bounds = array<i64: 32, 96>}, {pipeline_mode = #tpu.pipeline_mode<synchronous>, transform_indices = @transform_2, window_bounds = array<i64: 32, 32>}, {pipeline_mode = #tpu.pipeline_mode<synchronous>, transform_indices = @transform_3, window_bounds = array<i64: 16, 16>}, {pipeline_mode = #tpu.pipeline_mode<synchronous>, transform_indices = @transform_4, window_bounds = array<i64: 2, 8, 32>}]} {
    %c0 = arith.constant 0 : index
    %c0_0 = arith.constant 0 : index
    %c0_1 = arith.constant 0 : index
    %0 = vector.load %arg1[%c0, %c0_0, %c0_1] : memref<2x8x32xf32, #tpu.memory_space<vmem>>, vector<2x8x32xf32>
    %1 = vector.shape_cast %0 : vector<2x8x32xf32> to vector<16x32xf32>
    %c0_2 = arith.constant 0 : index
    %c0_3 = arith.constant 0 : index
    %2 = vector.load %arg2[%c0_2, %c0_3] : memref<32x96xf32, #tpu.memory_space<vmem>>, vector<32x96xf32>
    %cst = arith.constant dense<0.000000e+00> : vector<16x96xf32>
    %3 = tpu.matmul %1, %2, %cst {dimension_numbers = #tpu.dot_dimension_numbers<[1], [0], [0], [1], [0, 0, 1, 1], [], []>} : vector<16x32xf32>, vector<32x96xf32>, vector<16x96xf32> -> vector<16x96xf32>
    %4 = vector.extract_strided_slice %3 {offsets = [0, 0], sizes = [16, 8], strides = [1, 1]} : vector<16x96xf32> to vector<16x8xf32>
    %5 = vector.extract_strided_slice %3 {offsets = [0, 8], sizes = [16, 8], strides = [1, 1]} : vector<16x96xf32> to vector<16x8xf32>
    %6 = vector.extract_strided_slice %3 {offsets = [0, 16], sizes = [16, 8], strides = [1, 1]} : vector<16x96xf32> to vector<16x8xf32>
    %7 = vector.extract_strided_slice %3 {offsets = [0, 24], sizes = [16, 8], strides = [1, 1]} : vector<16x96xf32> to vector<16x8xf32>
    %8 = vector.shape_cast %4 : vector<16x8xf32> to vector<1x16x8xf32>
    %9 = vector.shape_cast %5 : vector<16x8xf32> to vector<1x16x8xf32>
    %10 = vector.shape_cast %6 : vector<16x8xf32> to vector<1x16x8xf32>
    %11 = vector.shape_cast %7 : vector<16x8xf32> to vector<1x16x8xf32>
    %12 = tpu.concatenate %8, %9, %10, %11 in 0 : vector<1x16x8xf32>, vector<1x16x8xf32>, vector<1x16x8xf32>, vector<1x16x8xf32> -> vector<4x16x8xf32>
    %13 = vector.extract_strided_slice %3 {offsets = [0, 32], sizes = [16, 8], strides = [1, 1]} : vector<16x96xf32> to vector<16x8xf32>
    %14 = vector.extract_strided_slice %3 {offsets = [0, 40], sizes = [16, 8], strides = [1, 1]} : vector<16x96xf32> to vector<16x8xf32>
    %15 = vector.extract_strided_slice %3 {offsets = [0, 48], sizes = [16, 8], strides = [1, 1]} : vector<16x96xf32> to vector<16x8xf32>
    %16 = vector.extract_strided_slice %3 {offsets = [0, 56], sizes = [16, 8], strides = [1, 1]} : vector<16x96xf32> to vector<16x8xf32>
    %17 = vector.shape_cast %13 : vector<16x8xf32> to vector<1x16x8xf32>
    %18 = vector.shape_cast %14 : vector<16x8xf32> to vector<1x16x8xf32>
    %19 = vector.shape_cast %15 : vector<16x8xf32> to vector<1x16x8xf32>
    %20 = vector.shape_cast %16 : vector<16x8xf32> to vector<1x16x8xf32>
    %21 = tpu.concatenate %17, %18, %19, %20 in 0 : vector<1x16x8xf32>, vector<1x16x8xf32>, vector<1x16x8xf32>, vector<1x16x8xf32> -> vector<4x16x8xf32>
    %22 = vector.extract_strided_slice %3 {offsets = [0, 64], sizes = [16, 8], strides = [1, 1]} : vector<16x96xf32> to vector<16x8xf32>
    %23 = vector.extract_strided_slice %3 {offsets = [0, 72], sizes = [16, 8], strides = [1, 1]} : vector<16x96xf32> to vector<16x8xf32>
    %24 = vector.extract_strided_slice %3 {offsets = [0, 80], sizes = [16, 8], strides = [1, 1]} : vector<16x96xf32> to vector<16x8xf32>
    %25 = vector.extract_strided_slice %3 {offsets = [0, 88], sizes = [16, 8], strides = [1, 1]} : vector<16x96xf32> to vector<16x8xf32>
    %26 = vector.shape_cast %22 : vector<16x8xf32> to vector<1x16x8xf32>
    %27 = vector.shape_cast %23 : vector<16x8xf32> to vector<1x16x8xf32>
    %28 = vector.shape_cast %24 : vector<16x8xf32> to vector<1x16x8xf32>
    %29 = vector.shape_cast %25 : vector<16x8xf32> to vector<1x16x8xf32>
    %30 = tpu.concatenate %26, %27, %28, %29 in 0 : vector<1x16x8xf32>, vector<1x16x8xf32>, vector<1x16x8xf32>, vector<1x16x8xf32> -> vector<4x16x8xf32>
    "tpu.trace_start"() <{level = 10 : i32, message = "hqd,hkd->hqk"}> : () -> ()
    %cst_4 = arith.constant dense<0.000000e+00> : vector<4x16x16xf32>
    %31 = tpu.matmul %12, %21, %cst_4 {dimension_numbers = #tpu.dot_dimension_numbers<[2], [2], [1], [1], [0, 0, 0, 1, 1, 1], [0], [0]>} : vector<4x16x8xf32>, vector<4x16x8xf32>, vector<4x16x16xf32> -> vector<4x16x16xf32>
    "tpu.trace_stop"() : () -> ()
    %c0_5 = arith.constant 0 : index
    %c0_6 = arith.constant 0 : index
    %32 = vector.load %arg4[%c0_5, %c0_6] : memref<16x16xf32, #tpu.memory_space<vmem>>, vector<16x16xf32>
    %33 = vector.shape_cast %32 : vector<16x16xf32> to vector<1x16x16xf32>
    %34 = vector.broadcast %33 : vector<1x16x16xf32> to vector<4x16x16xf32>
    %35 = arith.addf %31, %34 : vector<4x16x16xf32>
    %cst_7 = arith.constant dense<0xFF800000> : vector<4x16xf32>
    %36 = vector.multi_reduction <maximumf>, %35, %cst_7 [2] : vector<4x16x16xf32> to vector<4x16xf32>
    %37 = vector.shape_cast %36 : vector<4x16xf32> to vector<4x16x1xf32>
    %38 = vector.broadcast %37 : vector<4x16x1xf32> to vector<4x16x16xf32>
    %39 = arith.subf %35, %38 : vector<4x16x16xf32>
    %40 = math.exp %39 : vector<4x16x16xf32>
    %cst_8 = arith.constant dense<0.000000e+00> : vector<4x16xf32>
    %41 = vector.multi_reduction <add>, %40, %cst_8 [2] : vector<4x16x16xf32> to vector<4x16xf32>
    %42 = vector.shape_cast %41 : vector<4x16xf32> to vector<4x16x1xf32>
    %43 = tpu.reciprocal %42 {approx = true} : vector<4x16x1xf32> -> vector<4x16x1xf32>
    %44 = vector.broadcast %43 : vector<4x16x1xf32> to vector<4x16x16xf32>
    %45 = arith.mulf %40, %44 : vector<4x16x16xf32>
    "tpu.trace_start"() <{level = 10 : i32, message = "hqk,hkd->hqd"}> : () -> ()
    %cst_9 = arith.constant dense<0.000000e+00> : vector<4x16x8xf32>
    %46 = tpu.matmul %45, %30, %cst_9 {dimension_numbers = #tpu.dot_dimension_numbers<[2], [1], [1], [2], [0, 0, 0, 1, 1, 2], [0], [0]>} : vector<4x16x16xf32>, vector<4x16x8xf32>, vector<4x16x8xf32> -> vector<4x16x8xf32>
    "tpu.trace_stop"() : () -> ()
    %47 = vector.extract_strided_slice %46 {offsets = [0, 0, 0], sizes = [1, 16, 8], strides = [1, 1, 1]} : vector<4x16x8xf32> to vector<1x16x8xf32>
    %48 = vector.shape_cast %47 : vector<1x16x8xf32> to vector<16x8xf32>
    %49 = vector.extract_strided_slice %46 {offsets = [1, 0, 0], sizes = [1, 16, 8], strides = [1, 1, 1]} : vector<4x16x8xf32> to vector<1x16x8xf32>
    %50 = vector.shape_cast %49 : vector<1x16x8xf32> to vector<16x8xf32>
    %51 = vector.extract_strided_slice %46 {offsets = [2, 0, 0], sizes = [1, 16, 8], strides = [1, 1, 1]} : vector<4x16x8xf32> to vector<1x16x8xf32>
    %52 = vector.shape_cast %51 : vector<1x16x8xf32> to vector<16x8xf32>
    %53 = vector.extract_strided_slice %46 {offsets = [3, 0, 0], sizes = [1, 16, 8], strides = [1, 1, 1]} : vector<4x16x8xf32> to vector<1x16x8xf32>
    %54 = vector.shape_cast %53 : vector<1x16x8xf32> to vector<16x8xf32>
    %55 = tpu.concatenate %48, %50, %52, %54 in 1 : vector<16x8xf32>, vector<16x8xf32>, vector<16x8xf32>, vector<16x8xf32> -> vector<16x32xf32>
    %c0_10 = arith.constant 0 : index
    %c0_11 = arith.constant 0 : index
    %56 = vector.load %arg3[%c0_10, %c0_11] : memref<32x32xf32, #tpu.memory_space<vmem>>, vector<32x32xf32>
    %cst_12 = arith.constant dense<0.000000e+00> : vector<16x32xf32>
    %57 = tpu.matmul %55, %56, %cst_12 {dimension_numbers = #tpu.dot_dimension_numbers<[1], [0], [0], [1], [0, 0, 1, 1], [], []>} : vector<16x32xf32>, vector<32x32xf32>, vector<16x32xf32> -> vector<16x32xf32>
    %58 = vector.shape_cast %57 : vector<16x32xf32> to vector<2x8x32xf32>
    %c0_13 = arith.constant 0 : index
    %c0_14 = arith.constant 0 : index
    %c0_15 = arith.constant 0 : index
    %59 = vector.load %arg5[%c0_13, %c0_14, %c0_15] : memref<2x8x32xf32, #tpu.memory_space<vmem>>, vector<2x8x32xf32>
    tpu.vector_store %arg5[%c0_13, %c0_14, %c0_15], %58 {strides = array<i32>} : memref<2x8x32xf32, #tpu.memory_space<vmem>>, vector<2x8x32xf32>,
    return
  }
  func.func @transform_0(%arg0: i32) -> (i32, i32, i32) {
    %c0_i32 = arith.constant 0 : i32
    %c0_i32_0 = arith.constant 0 : i32
    %c0_i32_1 = arith.constant 0 : i32
    %c0_i32_2 = arith.constant 0 : i32
    return %c0_i32, %c0_i32_0, %c0_i32_1 : i32, i32, i32
  }
  func.func @transform_1(%arg0: i32) -> (i32, i32) {
    %c0_i32 = arith.constant 0 : i32
    %c0_i32_0 = arith.constant 0 : i32
    %c0_i32_1 = arith.constant 0 : i32
    return %c0_i32, %c0_i32_0 : i32, i32
  }
  func.func @transform_2(%arg0: i32) -> (i32, i32) {
    %c0_i32 = arith.constant 0 : i32
    %c0_i32_0 = arith.constant 0 : i32
    %c0_i32_1 = arith.constant 0 : i32
    return %c0_i32, %c0_i32_0 : i32, i32
  }
  func.func @transform_3(%arg0: i32) -> (i32, i32) {
    %c0_i32 = arith.constant 0 : i32
    %c0_i32_0 = arith.constant 0 : i32
    %c0_i32_1 = arith.constant 0 : i32
    return %c0_i32, %c0_i32_0 : i32, i32
  }
  func.func @transform_4(%arg0: i32) -> (i32, i32, i32) {
    %c0_i32 = arith.constant 0 : i32
    %c0_i32_0 = arith.constant 0 : i32
    %c0_i32_1 = arith.constant 0 : i32
    %c0_i32_2 = arith.constant 0 : i32
    return %c0_i32, %c0_i32_0, %c0_i32_1 : i32, i32, i32
  }
}

</mosaic_0001>

<llo_original>
// kernel: tpu_custom_call.1
$region0: #{tpu_custom_call.1}
  #allocation0 [shape = 'u32[]', space=smem, size = 0x4, offset = 0x4, fixed_abs, tag = 'smem constant byte address 0x4 - core index']
  #allocation1 [shape = 'u32[144,128]{1,0:T(1,128)}', space=vmem, size = 0x12000, scoped, tag = 'internal scratch']
  %s0 = inlined_call_operand.hbm [shape: f32[2,8,32], index: 0, kind: input, shape index: {}]
  %s1 = inlined_call_operand.hbm [shape: f32[32,96], index: 1, kind: input, shape index: {}]
  %s2 = inlined_call_operand.hbm [shape: f32[32,32], index: 2, kind: input, shape index: {}]
  %s3 = inlined_call_operand.hbm [shape: f32[16,16], index: 3, kind: input, shape index: {}]
  %s4 = inlined_call_operand.hbm [shape: f32[2,8,32], index: 4, kind: output, shape index: {}]
  %s5 = sld [smem:[#allocation0]]
  $region42: #{tpu_custom_call.1} parent=0
    _
  %s7 = ssub.s32 1, %s5
  %s8 = scalar_select 0, %s7, %s5
  $region1: #{tpu_custom_call.1} parent=0
    #allocation2 [shape = 'u8[8192]{0}', space=vmem, size = 0x2000, scoped, tag = 'input window, operand 0, single buffered']
    #allocation3 [shape = 's32[1]{0}', space=sflag, size = 0x4, scoped, tag = 'scoped memory for tpu_custom_call.1']
    #allocation4 [shape = 's32[1]{0}', space=sflag, size = 0x4, scoped, tag = 'scoped memory for tpu_custom_call.1']
    #allocation5 [shape = 'u8[16384]{0}', space=vmem, size = 0x4000, scoped, tag = 'input window, operand 1, single buffered']
    #allocation6 [shape = 's32[1]{0}', space=sflag, size = 0x4, scoped, tag = 'scoped memory for tpu_custom_call.1']
    #allocation7 [shape = 'u8[16384]{0}', space=vmem, size = 0x4000, scoped, tag = 'input window, operand 2, single buffered']
    #allocation8 [shape = 'u8[8192]{0}', space=vmem, size = 0x2000, scoped, tag = 'input window, operand 3, single buffered']
    #allocation9 [shape = 's32[1]{0}', space=sflag, size = 0x4, scoped, tag = 'scoped memory for tpu_custom_call.1']
    #allocation10 [shape = 'u8[8192]{0}', space=vmem, size = 0x2000, scoped, tag = 'output window, operand 0, single buffered']
    %9 = vsyncpa [#allocation3], 0
    %10 = vsyncpa [#allocation6], 0
    %11 = vsyncpa [#allocation9], 0
    %12 = vsyncpa [#allocation4], 0
    // Predicated region
    $region2: #{tpu_custom_call.1} parent=1 // pred_check
      _
    $region3: #{tpu_custom_call.1} parent=1 // pred_check_branch
      %14 = sbr.rel (0) target = $region5
    $region4: #{tpu_custom_call.1} parent=1 // pred_region
      %s16 = ssub.s32 256, 256
      %17 = vsyncadd [#allocation3], %s16
      %s18 = sshll.u32 [#allocation2], 4
      %s19 = int_to_ptr.vmem [resolvable:$true] %s18
      %24 = dma.hbm_to_vmem [thread:$0]  %s0, 256, %s19, [#allocation3], 128, 128, 8
    $region5: #{tpu_custom_call.1} parent=1 // pred_fallthru
      _
    // Predicated region
    $region6: #{tpu_custom_call.1} parent=1 // pred_check
      _
    $region7: #{tpu_custom_call.1} parent=1 // pred_check_branch
      %26 = sbr.rel (0) target = $region9
    $region8: #{tpu_custom_call.1} parent=1 // pred_region
      %s28 = ssub.s32 512, 512
      %29 = vsyncadd [#allocation6], %s28
      %s30 = sshll.u32 [#allocation5], 4
      %s31 = int_to_ptr.vmem [resolvable:$true] %s30
      %36 = dma.hbm_to_vmem [thread:$0]  %s1, 512, %s31, [#allocation6], 128, 128, 8
    $region9: #{tpu_custom_call.1} parent=1 // pred_fallthru
      _
    // Predicated region
    $region10: #{tpu_custom_call.1} parent=1 // pred_check
      _
    $region11: #{tpu_custom_call.1} parent=1 // pred_check_branch
      %38 = sbr.rel (0) target = $region13
    $region12: #{tpu_custom_call.1} parent=1 // pred_region
      %s40 = ssub.s32 512, 512
      %41 = vsyncadd [#allocation6], %s40
      %s42 = sshll.u32 [#allocation7], 4
      %s43 = int_to_ptr.vmem [resolvable:$true] %s42
      %48 = dma.hbm_to_vmem [thread:$0]  %s2, 512, %s43, [#allocation6], 128, 128, 8
    $region13: #{tpu_custom_call.1} parent=1 // pred_fallthru
      _
    // Predicated region
    $region14: #{tpu_custom_call.1} parent=1 // pred_check
      _
    $region15: #{tpu_custom_call.1} parent=1 // pred_check_branch
      %50 = sbr.rel (0) target = $region17
    $region16: #{tpu_custom_call.1} parent=1 // pred_region
      %s52 = ssub.s32 256, 256
      %53 = vsyncadd [#allocation9], %s52
      %s54 = sshll.u32 [#allocation8], 4
      %s55 = int_to_ptr.vmem [resolvable:$true] %s54
      %60 = dma.hbm_to_vmem [thread:$0]  %s3, 256, %s55, [#allocation9], 128, 128, 8
    $region17: #{tpu_custom_call.1} parent=1 // pred_fallthru
      _
    // Predicated region
    $region18: #{tpu_custom_call.1} parent=1 // pred_check
      _
    $region19: #{tpu_custom_call.1} parent=1 // pred_check_branch
      %62 = sbr.rel (0) target = $region21
    $region20: #{tpu_custom_call.1} parent=1 // pred_region
      %63 = dma.done [#allocation3], 256
    $region21: #{tpu_custom_call.1} parent=1 // pred_fallthru
      _
    // Predicated region
    $region22: #{tpu_custom_call.1} parent=1 // pred_check
      _
    $region23: #{tpu_custom_call.1} parent=1 // pred_check_branch
      %65 = sbr.rel (0) target = $region25
    $region24: #{tpu_custom_call.1} parent=1 // pred_region
      %66 = dma.done [#allocation6], 512
    $region25: #{tpu_custom_call.1} parent=1 // pred_fallthru
      _
    // Predicated region
    $region26: #{tpu_custom_call.1} parent=1 // pred_check
      _
    $region27: #{tpu_custom_call.1} parent=1 // pred_check_branch
      %68 = sbr.rel (0) target = $region29
    $region28: #{tpu_custom_call.1} parent=1 // pred_region
      %69 = dma.done [#allocation6], 512
    $region29: #{tpu_custom_call.1} parent=1 // pred_fallthru
      _
    // Predicated region
    $region30: #{tpu_custom_call.1} parent=1 // pred_check
      _
    $region31: #{tpu_custom_call.1} parent=1 // pred_check_branch
      %71 = sbr.rel (0) target = $region33
    $region32: #{tpu_custom_call.1} parent=1 // pred_region
      %72 = dma.done [#allocation9], 256
    $region33: #{tpu_custom_call.1} parent=1 // pred_fallthru
      _
    %v73 = vld [vmem:[#allocation2] sm:$0xff]
    %v74 = vld [vmem:[#allocation2 + $0x8] sm:$0xff]
    %v75 = vld [vmem:[#allocation5] sm:$0xff]
    %v76 = vld [vmem:[#allocation5 + $0x8] sm:$0xff]
    %v77 = vld [vmem:[#allocation5 + $0x10] sm:$0xff]
    %v78 = vld [vmem:[#allocation5 + $0x18] sm:$0xff]
    %vm79 = vcmask 261120
    %v81 = vsel %vm79, %v73, 0
    %v84 = vsel %vm79, %v74, 0
    %86 = vmatprep.subr.mxu0 0.0
    %87 = vmatpush1.msra.mxu0 %v75
    %88 = vmatprep.subr.mxu0 0.0
    %89 = vmatpush1.msra.mxu0 %v76
    %90 = vmatprep.subr.mxu0 0.0
    %91 = vmatpush1.msra.mxu0 %v77
    %92 = vmatprep.subr.mxu0 0.0
    %93 = vmatpush1.msra.mxu0 %v78
    %94 = vmatprep.subr.mxu0 0.0
    %95 = vmatpush1.msra.mxu0 0.0
    %96 = vmatprep.subr.mxu0 0.0
    %97 = vmatpush1.msra.mxu0 0.0
    %98 = vmatprep.subr.mxu0 0.0
    %99 = vmatpush1.msra.mxu0 0.0
    %100 = vmatprep.subr.mxu0 0.0
    %101 = vmatpush1.msra.mxu0 0.0
    %102 = vmatprep.subr.mxu0 0.0
    %103 = vmatpush1.msra.mxu0 0.0
    %104 = vmatprep.subr.mxu0 0.0
    %105 = vmatpush1.msra.mxu0 0.0
    %106 = vmatprep.subr.mxu0 0.0
    %107 = vmatpush1.msra.mxu0 0.0
    %108 = vmatprep.subr.mxu0 0.0
    %109 = vmatpush1.msra.mxu0 0.0
    %110 = vmatprep.subr.mxu0 0.0
    %111 = vmatpush1.msra.mxu0 0.0
    %112 = vmatprep.subr.mxu0 0.0
    %113 = vmatpush1.msra.mxu0 0.0
    %114 = vmatprep.subr.mxu0 0.0
    %115 = vmatpush1.msra.mxu0 0.0
    %116 = vmatprep.subr.mxu0 0.0
    %117 = vmatpush1.msra.mxu0 0.0
    %118 = vmatprep.subr.mxu0 0.0
    %119 = vmatpush1.msra.mxu0 0.0
    %120 = vmatprep.subr.mxu0 0.0
    %121 = vmatpush1.msra.mxu0 0.0
    %122 = vmatprep.subr.mxu0 0.0
    %123 = vmatpush1.msra.mxu0 0.0
    %124 = vmatprep.subr.mxu0 0.0
    %125 = vmatpush1.msra.mxu0 0.0
    %126 = vmatprep.subr.mxu0 0.0
    %127 = vmatpush1.msra.mxu0 0.0
    %128 = vmatprep.subr.mxu0 0.0
    %129 = vmatpush1.msra.mxu0 0.0
    %130 = vmatprep.subr.mxu0 0.0
    %131 = vmatpush1.msra.mxu0 0.0
    %132 = vmatprep.subr.mxu0 0.0
    %133 = vmatpush1.msra.mxu0 0.0
    %134 = vmatprep.subr.mxu0 0.0
    %135 = vmatpush1.msra.mxu0 0.0
    %136 = vmatprep.subr.mxu0 0.0
    %137 = vmatpush1.msra.mxu0 0.0
    %138 = vmatprep.subr.mxu0 0.0
    %139 = vmatpush1.msra.mxu0 0.0
    %140 = vmatprep.subr.mxu0 0.0
    %141 = vmatpush1.msra.mxu0 0.0
    %142 = vmatprep.subr.mxu0 0.0
    %143 = vmatpush1.msra.mxu0 0.0
    %144 = vmatprep.subr.mxu0 0.0
    %145 = vmatpush1.msra.mxu0 0.0
    %146 = vmatprep.subr.mxu0 0.0
    %147 = vmatpush1.msra.mxu0 0.0
    %148 = vmatprep.subr.mxu0 0.0
    %149 = vmatpush1.msra.mxu0 0.0
    %150 = vmatprep.mubr.f32.mxu0 0.0
    %151 = vmatmul.mubr.f32.gmra.mrb[0].mxu0 %v81
    %v152 = vpop.f32.mrb[0].mxu0
    %v153 = vadd.f32 0.0, %v152
    %v154 = vpop.f32.mrb[0].mxu0
    %155 = vmatprep.mubr.f32.mxu0 0.0
    %156 = vmatmul.mubr.f32.gmra.mrb[0].mxu0 %v84
    %v157 = vpop.f32.mrb[0].mxu0
    %v158 = vadd.f32 0.0, %v157
    %v159 = vpop.f32.mrb[0].mxu0
    %160 = vdwg.mxu0
    %163 = vrot.lane.b32.xlu0 %v153, 120
    %v164 = vpop.permute.xlu0 %163
    %165 = vrot.lane.b32.xlu0 %v158, 120
    %v166 = vpop.permute.xlu0 %165
    %167 = vrot.lane.b32.xlu0 %v153, 112
    %v168 = vpop.permute.xlu0 %167
    %169 = vrot.lane.b32.xlu0 %v158, 112
    %v170 = vpop.permute.xlu0 %169
    %171 = vrot.lane.b32.xlu0 %v153, 104
    %v172 = vpop.permute.xlu0 %171
    %173 = vrot.lane.b32.xlu0 %v158, 104
    %v174 = vpop.permute.xlu0 %173
    %v175 = vld [vmem:[#allocation8] sm:$0xff]
    %v176 = vld [vmem:[#allocation8 + $0x8] sm:$0xff]
    %177 = vrot.lane.b32.xlu0 %v153, 96
    %v178 = vpop.permute.xlu0 %177
    %179 = vrot.lane.b32.xlu0 %v158, 96
    %v180 = vpop.permute.xlu0 %179
    %vm181 = vcmask 64512
    %v182 = vsel %vm181, %v153, 0
    %v184 = vsel %vm181, %v158, 0
    %v186 = vsel %vm181, %v178, 0
    %v188 = vsel %vm181, %v180, 0
    %190 = vmatprep.subr.mxu0 0.0
    %191 = vmatpush1.xpose.msra.mxu0 %v186
    %192 = vmatprep.subr.mxu0 0.0
    %193 = vmatpush1.xpose.msra.mxu0 %v188
    %194 = vmatprep.subr.mxu0 0.0
    %195 = vmatpush1.xpose.msra.mxu0 0.0
    %196 = vmatprep.subr.mxu0 0.0
    %197 = vmatpush1.xpose.msra.mxu0 0.0
    %198 = vmatprep.subr.mxu0 0.0
    %199 = vmatpush1.xpose.msra.mxu0 0.0
    %200 = vmatprep.subr.mxu0 0.0
    %201 = vmatpush1.xpose.msra.mxu0 0.0
    %202 = vmatprep.subr.mxu0 0.0
    %203 = vmatpush1.xpose.msra.mxu0 0.0
    %204 = vmatprep.subr.mxu0 0.0
    %205 = vmatpush1.xpose.msra.mxu0 0.0
    %206 = vmatprep.subr.mxu0 0.0
    %207 = vmatpush1.xpose.msra.mxu0 0.0
    %208 = vmatprep.subr.mxu0 0.0
    %209 = vmatpush1.xpose.msra.mxu0 0.0
    %210 = vmatprep.subr.mxu0 0.0
    %211 = vmatpush1.xpose.msra.mxu0 0.0
    %212 = vmatprep.subr.mxu0 0.0
    %213 = vmatpush1.xpose.msra.mxu0 0.0
    %214 = vmatprep.subr.mxu0 0.0
    %215 = vmatpush1.xpose.msra.mxu0 0.0
    %216 = vmatprep.subr.mxu0 0.0
    %217 = vmatpush1.xpose.msra.mxu0 0.0
    %218 = vmatprep.subr.mxu0 0.0
    %219 = vmatpush1.xpose.msra.mxu0 0.0
    %220 = vmatprep.subr.mxu0 0.0
    %221 = vmatpush1.xpose.msra.mxu0 0.0
    %222 = vmatprep.subr.mxu0 0.0
    %223 = vmatpush1.xpose.msra.mxu0 0.0
    %224 = vmatprep.subr.mxu0 0.0
    %225 = vmatpush1.xpose.msra.mxu0 0.0
    %226 = vmatprep.subr.mxu0 0.0
    %227 = vmatpush1.xpose.msra.mxu0 0.0
    %228 = vmatprep.subr.mxu0 0.0
    %229 = vmatpush1.xpose.msra.mxu0 0.0
    %230 = vmatprep.subr.mxu0 0.0
    %231 = vmatpush1.xpose.msra.mxu0 0.0
    %232 = vmatprep.subr.mxu0 0.0
    %233 = vmatpush1.xpose.msra.mxu0 0.0
    %234 = vmatprep.subr.mxu0 0.0
    %235 = vmatpush1.xpose.msra.mxu0 0.0
    %236 = vmatprep.subr.mxu0 0.0
    %237 = vmatpush1.xpose.msra.mxu0 0.0
    %238 = vmatprep.subr.mxu0 0.0
    %239 = vmatpush1.xpose.msra.mxu0 0.0
    %240 = vmatprep.subr.mxu0 0.0
    %241 = vmatpush1.xpose.msra.mxu0 0.0
    %242 = vmatprep.subr.mxu0 0.0
    %243 = vmatpush1.xpose.msra.mxu0 0.0
    %244 = vmatprep.subr.mxu0 0.0
    %245 = vmatpush1.xpose.msra.mxu0 0.0
    %246 = vmatprep.subr.mxu0 0.0
    %247 = vmatpush1.xpose.msra.mxu0 0.0
    %248 = vmatprep.subr.mxu0 0.0
    %249 = vmatpush1.xpose.msra.mxu0 0.0
    %250 = vmatprep.subr.mxu0 0.0
    %251 = vmatpush1.xpose.msra.mxu0 0.0
    %252 = vmatprep.subr.mxu0 0.0
    %253 = vmatpush1.xpose.msra.mxu0 0.0
    %254 = vmatprep.mubr.f32.mxu0 0.0
    %255 = vmatmul.mubr.f32.gmra.mrb[0].mxu0 %v182
    %v256 = vpop.f32.mrb[0].mxu0
    %v257 = vadd.f32 %v175, %v256
    %v258 = vpop.f32.mrb[0].mxu0
    %259 = vmatprep.mubr.f32.mxu0 0.0
    %260 = vmatmul.mubr.f32.gmra.mrb[0].mxu0 %v184
    %v261 = vpop.f32.mrb[0].mxu0
    %v262 = vadd.f32 %v176, %v261
    %v263 = vpop.f32.mrb[0].mxu0
    %264 = vdwg.mxu0
    %265 = vrot.lane.b32.xlu0 %v164, 96
    %v266 = vpop.permute.xlu0 %265
    %267 = vrot.lane.b32.xlu0 %v166, 96
    %v268 = vpop.permute.xlu0 %267
    %v269 = vsel %vm181, %v164, 0
    %v271 = vsel %vm181, %v166, 0
    %v273 = vsel %vm181, %v266, 0
    %v275 = vsel %vm181, %v268, 0
    %277 = vmatprep.subr.mxu0 0.0
    %278 = vmatpush1.xpose.msra.mxu0 %v273
    %279 = vmatprep.subr.mxu0 0.0
    %280 = vmatpush1.xpose.msra.mxu0 %v275
    %281 = vmatprep.subr.mxu0 0.0
    %282 = vmatpush1.xpose.msra.mxu0 0.0
    %283 = vmatprep.subr.mxu0 0.0
    %284 = vmatpush1.xpose.msra.mxu0 0.0
    %285 = vmatprep.subr.mxu0 0.0
    %286 = vmatpush1.xpose.msra.mxu0 0.0
    %287 = vmatprep.subr.mxu0 0.0
    %288 = vmatpush1.xpose.msra.mxu0 0.0
    %289 = vmatprep.subr.mxu0 0.0
    %290 = vmatpush1.xpose.msra.mxu0 0.0
    %291 = vmatprep.subr.mxu0 0.0
    %292 = vmatpush1.xpose.msra.mxu0 0.0
    %293 = vmatprep.subr.mxu0 0.0
    %294 = vmatpush1.xpose.msra.mxu0 0.0
    %295 = vmatprep.subr.mxu0 0.0
    %296 = vmatpush1.xpose.msra.mxu0 0.0
    %297 = vmatprep.subr.mxu0 0.0
    %298 = vmatpush1.xpose.msra.mxu0 0.0
    %299 = vmatprep.subr.mxu0 0.0
    %300 = vmatpush1.xpose.msra.mxu0 0.0
    %301 = vmatprep.subr.mxu0 0.0
    %302 = vmatpush1.xpose.msra.mxu0 0.0
    %303 = vmatprep.subr.mxu0 0.0
    %304 = vmatpush1.xpose.msra.mxu0 0.0
    %305 = vmatprep.subr.mxu0 0.0
    %306 = vmatpush1.xpose.msra.mxu0 0.0
    %307 = vmatprep.subr.mxu0 0.0
    %308 = vmatpush1.xpose.msra.mxu0 0.0
    %309 = vmatprep.subr.mxu0 0.0
    %310 = vmatpush1.xpose.msra.mxu0 0.0
    %311 = vmatprep.subr.mxu0 0.0
    %312 = vmatpush1.xpose.msra.mxu0 0.0
    %313 = vmatprep.subr.mxu0 0.0
    %314 = vmatpush1.xpose.msra.mxu0 0.0
    %315 = vmatprep.subr.mxu0 0.0
    %316 = vmatpush1.xpose.msra.mxu0 0.0
    %317 = vmatprep.subr.mxu0 0.0
    %318 = vmatpush1.xpose.msra.mxu0 0.0
    %319 = vmatprep.subr.mxu0 0.0
    %320 = vmatpush1.xpose.msra.mxu0 0.0
    %321 = vmatprep.subr.mxu0 0.0
    %322 = vmatpush1.xpose.msra.mxu0 0.0
    %323 = vmatprep.subr.mxu0 0.0
    %324 = vmatpush1.xpose.msra.mxu0 0.0
    %325 = vmatprep.subr.mxu0 0.0
    %326 = vmatpush1.xpose.msra.mxu0 0.0
    %327 = vmatprep.subr.mxu0 0.0
    %328 = vmatpush1.xpose.msra.mxu0 0.0
    %329 = vmatprep.subr.mxu0 0.0
    %330 = vmatpush1.xpose.msra.mxu0 0.0
    %331 = vmatprep.subr.mxu0 0.0
    %332 = vmatpush1.xpose.msra.mxu0 0.0
    %333 = vmatprep.subr.mxu0 0.0
    %334 = vmatpush1.xpose.msra.mxu0 0.0
    %335 = vmatprep.subr.mxu0 0.0
    %336 = vmatpush1.xpose.msra.mxu0 0.0
    %337 = vmatprep.subr.mxu0 0.0
    %338 = vmatpush1.xpose.msra.mxu0 0.0
    %339 = vmatprep.subr.mxu0 0.0
    %340 = vmatpush1.xpose.msra.mxu0 0.0
    %341 = vmatprep.mubr.f32.mxu0 0.0
    %342 = vmatmul.mubr.f32.gmra.mrb[0].mxu0 %v269
    %v343 = vpop.f32.mrb[0].mxu0
    %v344 = vadd.f32 %v175, %v343
    %v345 = vpop.f32.mrb[0].mxu0
    %346 = vmatprep.mubr.f32.mxu0 0.0
    %347 = vmatmul.mubr.f32.gmra.mrb[0].mxu0 %v271
    %v348 = vpop.f32.mrb[0].mxu0
    %v349 = vadd.f32 %v176, %v348
    %v350 = vpop.f32.mrb[0].mxu0
    %351 = vdwg.mxu0
    %352 = vrot.lane.b32.xlu0 %v168, 96
    %v353 = vpop.permute.xlu0 %352
    %354 = vrot.lane.b32.xlu0 %v170, 96
    %v355 = vpop.permute.xlu0 %354
    %v356 = vsel %vm181, %v168, 0
    %v358 = vsel %vm181, %v170, 0
    %v360 = vsel %vm181, %v353, 0
    %v362 = vsel %vm181, %v355, 0
    %364 = vmatprep.subr.mxu0 0.0
    %365 = vmatpush1.xpose.msra.mxu0 %v360
    %366 = vmatprep.subr.mxu0 0.0
    %367 = vmatpush1.xpose.msra.mxu0 %v362
    %368 = vmatprep.subr.mxu0 0.0
    %369 = vmatpush1.xpose.msra.mxu0 0.0
    %370 = vmatprep.subr.mxu0 0.0
    %371 = vmatpush1.xpose.msra.mxu0 0.0
    %372 = vmatprep.subr.mxu0 0.0
    %373 = vmatpush1.xpose.msra.mxu0 0.0
    %374 = vmatprep.subr.mxu0 0.0
    %375 = vmatpush1.xpose.msra.mxu0 0.0
    %376 = vmatprep.subr.mxu0 0.0
    %377 = vmatpush1.xpose.msra.mxu0 0.0
    %378 = vmatprep.subr.mxu0 0.0
    %379 = vmatpush1.xpose.msra.mxu0 0.0
    %380 = vmatprep.subr.mxu0 0.0
    %381 = vmatpush1.xpose.msra.mxu0 0.0
    %382 = vmatprep.subr.mxu0 0.0
    %383 = vmatpush1.xpose.msra.mxu0 0.0
    %384 = vmatprep.subr.mxu0 0.0
    %385 = vmatpush1.xpose.msra.mxu0 0.0
    %386 = vmatprep.subr.mxu0 0.0
    %387 = vmatpush1.xpose.msra.mxu0 0.0
    %388 = vmatprep.subr.mxu0 0.0
    %389 = vmatpush1.xpose.msra.mxu0 0.0
    %390 = vmatprep.subr.mxu0 0.0
    %391 = vmatpush1.xpose.msra.mxu0 0.0
    %392 = vmatprep.subr.mxu0 0.0
    %393 = vmatpush1.xpose.msra.mxu0 0.0
    %394 = vmatprep.subr.mxu0 0.0
    %395 = vmatpush1.xpose.msra.mxu0 0.0
    %396 = vmatprep.subr.mxu0 0.0
    %397 = vmatpush1.xpose.msra.mxu0 0.0
    %398 = vmatprep.subr.mxu0 0.0
    %399 = vmatpush1.xpose.msra.mxu0 0.0
    %400 = vmatprep.subr.mxu0 0.0
    %401 = vmatpush1.xpose.msra.mxu0 0.0
    %402 = vmatprep.subr.mxu0 0.0
    %403 = vmatpush1.xpose.msra.mxu0 0.0
    %404 = vmatprep.subr.mxu0 0.0
    %405 = vmatpush1.xpose.msra.mxu0 0.0
    %406 = vmatprep.subr.mxu0 0.0
    %407 = vmatpush1.xpose.msra.mxu0 0.0
    %408 = vmatprep.subr.mxu0 0.0
    %409 = vmatpush1.xpose.msra.mxu0 0.0
    %410 = vmatprep.subr.mxu0 0.0
    %411 = vmatpush1.xpose.msra.mxu0 0.0
    %412 = vmatprep.subr.mxu0 0.0
    %413 = vmatpush1.xpose.msra.mxu0 0.0
    %414 = vmatprep.subr.mxu0 0.0
    %415 = vmatpush1.xpose.msra.mxu0 0.0
    %416 = vmatprep.subr.mxu0 0.0
    %417 = vmatpush1.xpose.msra.mxu0 0.0
    %418 = vmatprep.subr.mxu0 0.0
    %419 = vmatpush1.xpose.msra.mxu0 0.0
    %420 = vmatprep.subr.mxu0 0.0
    %421 = vmatpush1.xpose.msra.mxu0 0.0
    %422 = vmatprep.subr.mxu0 0.0
    %423 = vmatpush1.xpose.msra.mxu0 0.0
    %424 = vmatprep.subr.mxu0 0.0
    %425 = vmatpush1.xpose.msra.mxu0 0.0
    %426 = vmatprep.subr.mxu0 0.0
    %427 = vmatpush1.xpose.msra.mxu0 0.0
    %428 = vmatprep.mubr.f32.mxu0 0.0
    %429 = vmatmul.mubr.f32.gmra.mrb[0].mxu0 %v356
    %v430 = vpop.f32.mrb[0].mxu0
    %v431 = vadd.f32 %v175, %v430
    %v432 = vpop.f32.mrb[0].mxu0
    %433 = vmatprep.mubr.f32.mxu0 0.0
    %434 = vmatmul.mubr.f32.gmra.mrb[0].mxu0 %v358
    %v435 = vpop.f32.mrb[0].mxu0
    %v436 = vadd.f32 %v176, %v435
    %v437 = vpop.f32.mrb[0].mxu0
    %438 = vdwg.mxu0
    %439 = vrot.lane.b32.xlu0 %v172, 96
    %v440 = vpop.permute.xlu0 %439
    %441 = vrot.lane.b32.xlu0 %v174, 96
    %v442 = vpop.permute.xlu0 %441
    %v443 = vsel %vm181, %v172, 0
    %v445 = vsel %vm181, %v174, 0
    %v447 = vsel %vm181, %v440, 0
    %v449 = vsel %vm181, %v442, 0
    %451 = vmatprep.subr.mxu0 0.0
    %452 = vmatpush1.xpose.msra.mxu0 %v447
    %453 = vmatprep.subr.mxu0 0.0
    %454 = vmatpush1.xpose.msra.mxu0 %v449
    %455 = vmatprep.subr.mxu0 0.0
    %456 = vmatpush1.xpose.msra.mxu0 0.0
    %457 = vmatprep.subr.mxu0 0.0
    %458 = vmatpush1.xpose.msra.mxu0 0.0
    %459 = vmatprep.subr.mxu0 0.0
    %460 = vmatpush1.xpose.msra.mxu0 0.0
    %461 = vmatprep.subr.mxu0 0.0
    %462 = vmatpush1.xpose.msra.mxu0 0.0
    %463 = vmatprep.subr.mxu0 0.0
    %464 = vmatpush1.xpose.msra.mxu0 0.0
    %465 = vmatprep.subr.mxu0 0.0
    %466 = vmatpush1.xpose.msra.mxu0 0.0
    %467 = vmatprep.subr.mxu0 0.0
    %468 = vmatpush1.xpose.msra.mxu0 0.0
    %469 = vmatprep.subr.mxu0 0.0
    %470 = vmatpush1.xpose.msra.mxu0 0.0
    %471 = vmatprep.subr.mxu0 0.0
    %472 = vmatpush1.xpose.msra.mxu0 0.0
    %473 = vmatprep.subr.mxu0 0.0
    %474 = vmatpush1.xpose.msra.mxu0 0.0
    %475 = vmatprep.subr.mxu0 0.0
    %476 = vmatpush1.xpose.msra.mxu0 0.0
    %477 = vmatprep.subr.mxu0 0.0
    %478 = vmatpush1.xpose.msra.mxu0 0.0
    %479 = vmatprep.subr.mxu0 0.0
    %480 = vmatpush1.xpose.msra.mxu0 0.0
    %481 = vmatprep.subr.mxu0 0.0
    %482 = vmatpush1.xpose.msra.mxu0 0.0
    %483 = vmatprep.subr.mxu0 0.0
    %484 = vmatpush1.xpose.msra.mxu0 0.0
    %485 = vmatprep.subr.mxu0 0.0
    %486 = vmatpush1.xpose.msra.mxu0 0.0
    %487 = vmatprep.subr.mxu0 0.0
    %488 = vmatpush1.xpose.msra.mxu0 0.0
    %489 = vmatprep.subr.mxu0 0.0
    %490 = vmatpush1.xpose.msra.mxu0 0.0
    %491 = vmatprep.subr.mxu0 0.0
    %492 = vmatpush1.xpose.msra.mxu0 0.0
    %493 = vmatprep.subr.mxu0 0.0
    %494 = vmatpush1.xpose.msra.mxu0 0.0
    %495 = vmatprep.subr.mxu0 0.0
    %496 = vmatpush1.xpose.msra.mxu0 0.0
    %497 = vmatprep.subr.mxu0 0.0
    %498 = vmatpush1.xpose.msra.mxu0 0.0
    %499 = vmatprep.subr.mxu0 0.0
    %500 = vmatpush1.xpose.msra.mxu0 0.0
    %501 = vmatprep.subr.mxu0 0.0
    %502 = vmatpush1.xpose.msra.mxu0 0.0
    %503 = vmatprep.subr.mxu0 0.0
    %504 = vmatpush1.xpose.msra.mxu0 0.0
    %505 = vmatprep.subr.mxu0 0.0
    %506 = vmatpush1.xpose.msra.mxu0 0.0
    %507 = vmatprep.subr.mxu0 0.0
    %508 = vmatpush1.xpose.msra.mxu0 0.0
    %509 = vmatprep.subr.mxu0 0.0
    %510 = vmatpush1.xpose.msra.mxu0 0.0
    %511 = vmatprep.subr.mxu0 0.0
    %512 = vmatpush1.xpose.msra.mxu0 0.0
    %513 = vmatprep.subr.mxu0 0.0
    %514 = vmatpush1.xpose.msra.mxu0 0.0
    %515 = vmatprep.mubr.f32.mxu0 0.0
    %516 = vmatmul.mubr.f32.gmra.mrb[0].mxu0 %v443
    %v517 = vpop.f32.mrb[0].mxu0
    %v518 = vadd.f32 %v175, %v517
    %v519 = vpop.f32.mrb[0].mxu0
    %520 = vmatprep.mubr.f32.mxu0 0.0
    %521 = vmatmul.mubr.f32.gmra.mrb[0].mxu0 %v445
    %v522 = vpop.f32.mrb[0].mxu0
    %v523 = vadd.f32 %v176, %v522
    %v524 = vpop.f32.mrb[0].mxu0
    %525 = vdwg.mxu0
    %vm526 = vcmask 130048
    %v527 = vsel %vm526, %v257, -inf
    %528 = vmax.xlane.f32.xlu0 %v527
    %v529 = vpop.xlane.xlu0 %528
    %v530 = vsel %vm526, %v262, -inf
    %531 = vmax.xlane.f32.xlu0 %v530
    %v532 = vpop.xlane.xlu0 %531
    %v533 = vsel %vm526, %v344, -inf
    %534 = vmax.xlane.f32.xlu0 %v533
    %v535 = vpop.xlane.xlu0 %534
    %v536 = vsel %vm526, %v349, -inf
    %537 = vmax.xlane.f32.xlu0 %v536
    %v538 = vpop.xlane.xlu0 %537
    %v539 = vsel %vm526, %v431, -inf
    %540 = vmax.xlane.f32.xlu0 %v539
    %v541 = vpop.xlane.xlu0 %540
    %v542 = vsel %vm526, %v436, -inf
    %543 = vmax.xlane.f32.xlu0 %v542
    %v544 = vpop.xlane.xlu0 %543
    %v545 = vsel %vm526, %v518, -inf
    %546 = vmax.xlane.f32.xlu0 %v545
    %v547 = vpop.xlane.xlu0 %546
    %v548 = vsel %vm526, %v523, -inf
    %549 = vmax.xlane.f32.xlu0 %v548
    %v550 = vpop.xlane.xlu0 %549
    %v551 = vsub.f32 %v257, %v529
    %v552 = vsub.f32 %v262, %v532
    %v553 = vsub.f32 %v344, %v535
    %v554 = vsub.f32 %v349, %v538
    %v555 = vsub.f32 %v431, %v541
    %v556 = vsub.f32 %v436, %v544
    %v557 = vsub.f32 %v518, %v547
    %v558 = vsub.f32 %v523, %v550
    %v559 = vmul.f32 %v551, 1.442695
    %v560 = vpow.pop %v559
    %v561 = vmul.f32 %v552, 1.442695
    %v562 = vpow.pop %v561
    %v563 = vmul.f32 %v553, 1.442695
    %v564 = vpow.pop %v563
    %v565 = vmul.f32 %v554, 1.442695
    %v566 = vpow.pop %v565
    %v567 = vmul.f32 %v555, 1.442695
    %v568 = vpow.pop %v567
    %v569 = vmul.f32 %v556, 1.442695
    %v570 = vpow.pop %v569
    %v571 = vmul.f32 %v557, 1.442695
    %v572 = vpow.pop %v571
    %v573 = vmul.f32 %v558, 1.442695
    %v574 = vpow.pop %v573
    %v575 = vsel %vm526, %v560, 0.0
    %576 = vadd.xlane.f32.xlu0 %v575
    %v577 = vpop.xlane.xlu0 %576
    %v578 = vsel %vm526, %v562, 0.0
    %579 = vadd.xlane.f32.xlu0 %v578
    %v580 = vpop.xlane.xlu0 %579
    %v581 = vsel %vm526, %v564, 0.0
    %582 = vadd.xlane.f32.xlu0 %v581
    %v583 = vpop.xlane.xlu0 %582
    %v584 = vsel %vm526, %v566, 0.0
    %585 = vadd.xlane.f32.xlu0 %v584
    %v586 = vpop.xlane.xlu0 %585
    %v587 = vsel %vm526, %v568, 0.0
    %588 = vadd.xlane.f32.xlu0 %v587
    %v589 = vpop.xlane.xlu0 %588
    %v590 = vsel %vm526, %v570, 0.0
    %591 = vadd.xlane.f32.xlu0 %v590
    %v592 = vpop.xlane.xlu0 %591
    %v593 = vsel %vm526, %v572, 0.0
    %594 = vadd.xlane.f32.xlu0 %v593
    %v595 = vpop.xlane.xlu0 %594
    %v596 = vsel %vm526, %v574, 0.0
    %597 = vadd.xlane.f32.xlu0 %v596
    %v598 = vpop.xlane.xlu0 %597
    %v599 = vrcp.pop %v577
    %v600 = vrcp.pop %v580
    %v601 = vrcp.pop %v583
    %v602 = vrcp.pop %v586
    %v603 = vrcp.pop %v589
    %v604 = vrcp.pop %v592
    %v605 = vrcp.pop %v595
    %v606 = vrcp.pop %v598
    %v607 = vmul.f32 %v560, %v599
    %v608 = vmul.f32 %v562, %v600
    %v609 = vmul.f32 %v564, %v601
    %v610 = vmul.f32 %v566, %v602
    %v611 = vmul.f32 %v568, %v603
    %v612 = vmul.f32 %v570, %v604
    %v613 = vmul.f32 %v572, %v605
    %v614 = vmul.f32 %v574, %v606
    %615 = vrot.lane.b32.xlu0 %v153, 64
    %v616 = vpop.permute.xlu0 %615
    %617 = vrot.lane.b32.xlu0 %v158, 64
    %v618 = vpop.permute.xlu0 %617
    %v622 = vsel %vm526, %v607, 0
    %v625 = vsel %vm526, %v608, 0
    %627 = vmatprep.subr.mxu0 0.0
    %628 = vmatpush1.msra.mxu0 %v616
    %629 = vmatprep.subr.mxu0 0.0
    %630 = vmatpush1.msra.mxu0 %v618
    %631 = vmatprep.subr.mxu0 0.0
    %632 = vmatpush1.msra.mxu0 0.0
    %633 = vmatprep.subr.mxu0 0.0
    %634 = vmatpush1.msra.mxu0 0.0
    %635 = vmatprep.subr.mxu0 0.0
    %636 = vmatpush1.msra.mxu0 0.0
    %637 = vmatprep.subr.mxu0 0.0
    %638 = vmatpush1.msra.mxu0 0.0
    %639 = vmatprep.subr.mxu0 0.0
    %640 = vmatpush1.msra.mxu0 0.0
    %641 = vmatprep.subr.mxu0 0.0
    %642 = vmatpush1.msra.mxu0 0.0
    %643 = vmatprep.subr.mxu0 0.0
    %644 = vmatpush1.msra.mxu0 0.0
    %645 = vmatprep.subr.mxu0 0.0
    %646 = vmatpush1.msra.mxu0 0.0
    %647 = vmatprep.subr.mxu0 0.0
    %648 = vmatpush1.msra.mxu0 0.0
    %649 = vmatprep.subr.mxu0 0.0
    %650 = vmatpush1.msra.mxu0 0.0
    %651 = vmatprep.subr.mxu0 0.0
    %652 = vmatpush1.msra.mxu0 0.0
    %653 = vmatprep.subr.mxu0 0.0
    %654 = vmatpush1.msra.mxu0 0.0
    %655 = vmatprep.subr.mxu0 0.0
    %656 = vmatpush1.msra.mxu0 0.0
    %657 = vmatprep.subr.mxu0 0.0
    %658 = vmatpush1.msra.mxu0 0.0
    %659 = vmatprep.subr.mxu0 0.0
    %660 = vmatpush1.msra.mxu0 0.0
    %661 = vmatprep.subr.mxu0 0.0
    %662 = vmatpush1.msra.mxu0 0.0
    %663 = vmatprep.subr.mxu0 0.0
    %664 = vmatpush1.msra.mxu0 0.0
    %665 = vmatprep.subr.mxu0 0.0
    %666 = vmatpush1.msra.mxu0 0.0
    %667 = vmatprep.subr.mxu0 0.0
    %668 = vmatpush1.msra.mxu0 0.0
    %669 = vmatprep.subr.mxu0 0.0
    %670 = vmatpush1.msra.mxu0 0.0
    %671 = vmatprep.subr.mxu0 0.0
    %672 = vmatpush1.msra.mxu0 0.0
    %673 = vmatprep.subr.mxu0 0.0
    %674 = vmatpush1.msra.mxu0 0.0
    %675 = vmatprep.subr.mxu0 0.0
    %676 = vmatpush1.msra.mxu0 0.0
    %677 = vmatprep.subr.mxu0 0.0
    %678 = vmatpush1.msra.mxu0 0.0
    %679 = vmatprep.subr.mxu0 0.0
    %680 = vmatpush1.msra.mxu0 0.0
    %681 = vmatprep.subr.mxu0 0.0
    %682 = vmatpush1.msra.mxu0 0.0
    %683 = vmatprep.subr.mxu0 0.0
    %684 = vmatpush1.msra.mxu0 0.0
    %685 = vmatprep.subr.mxu0 0.0
    %686 = vmatpush1.msra.mxu0 0.0
    %687 = vmatprep.subr.mxu0 0.0
    %688 = vmatpush1.msra.mxu0 0.0
    %689 = vmatprep.subr.mxu0 0.0
    %690 = vmatpush1.msra.mxu0 0.0
    %691 = vmatprep.mubr.f32.mxu0 0.0
    %692 = vmatmul.mubr.f32.gmra.mrb[0].mxu0 %v622
    %v693 = vpop.f32.mrb[0].mxu0
    %v694 = vadd.f32 0.0, %v693
    %v695 = vpop.f32.mrb[0].mxu0
    %696 = vmatprep.mubr.f32.mxu0 0.0
    %697 = vmatmul.mubr.f32.gmra.mrb[0].mxu0 %v625
    %v698 = vpop.f32.mrb[0].mxu0
    %v699 = vadd.f32 0.0, %v698
    %v700 = vpop.f32.mrb[0].mxu0
    %701 = vdwg.mxu0
    %702 = vrot.lane.b32.xlu0 %v164, 64
    %v703 = vpop.permute.xlu0 %702
    %704 = vrot.lane.b32.xlu0 %v166, 64
    %v705 = vpop.permute.xlu0 %704
    %v709 = vsel %vm526, %v609, 0
    %v712 = vsel %vm526, %v610, 0
    %714 = vmatprep.subr.mxu0 0.0
    %715 = vmatpush1.msra.mxu0 %v703
    %716 = vmatprep.subr.mxu0 0.0
    %717 = vmatpush1.msra.mxu0 %v705
    %718 = vmatprep.subr.mxu0 0.0
    %719 = vmatpush1.msra.mxu0 0.0
    %720 = vmatprep.subr.mxu0 0.0
    %721 = vmatpush1.msra.mxu0 0.0
    %722 = vmatprep.subr.mxu0 0.0
    %723 = vmatpush1.msra.mxu0 0.0
    %724 = vmatprep.subr.mxu0 0.0
    %725 = vmatpush1.msra.mxu0 0.0
    %726 = vmatprep.subr.mxu0 0.0
    %727 = vmatpush1.msra.mxu0 0.0
    %728 = vmatprep.subr.mxu0 0.0
    %729 = vmatpush1.msra.mxu0 0.0
    %730 = vmatprep.subr.mxu0 0.0
    %731 = vmatpush1.msra.mxu0 0.0
    %732 = vmatprep.subr.mxu0 0.0
    %733 = vmatpush1.msra.mxu0 0.0
    %734 = vmatprep.subr.mxu0 0.0
    %735 = vmatpush1.msra.mxu0 0.0
    %736 = vmatprep.subr.mxu0 0.0
    %737 = vmatpush1.msra.mxu0 0.0
    %738 = vmatprep.subr.mxu0 0.0
    %739 = vmatpush1.msra.mxu0 0.0
    %740 = vmatprep.subr.mxu0 0.0
    %741 = vmatpush1.msra.mxu0 0.0
    %742 = vmatprep.subr.mxu0 0.0
    %743 = vmatpush1.msra.mxu0 0.0
    %744 = vmatprep.subr.mxu0 0.0
    %745 = vmatpush1.msra.mxu0 0.0
    %746 = vmatprep.subr.mxu0 0.0
    %747 = vmatpush1.msra.mxu0 0.0
    %748 = vmatprep.subr.mxu0 0.0
    %749 = vmatpush1.msra.mxu0 0.0
    %750 = vmatprep.subr.mxu0 0.0
    %751 = vmatpush1.msra.mxu0 0.0
    %752 = vmatprep.subr.mxu0 0.0
    %753 = vmatpush1.msra.mxu0 0.0
    %754 = vmatprep.subr.mxu0 0.0
    %755 = vmatpush1.msra.mxu0 0.0
    %756 = vmatprep.subr.mxu0 0.0
    %757 = vmatpush1.msra.mxu0 0.0
    %758 = vmatprep.subr.mxu0 0.0
    %759 = vmatpush1.msra.mxu0 0.0
    %760 = vmatprep.subr.mxu0 0.0
    %761 = vmatpush1.msra.mxu0 0.0
    %762 = vmatprep.subr.mxu0 0.0
    %763 = vmatpush1.msra.mxu0 0.0
    %764 = vmatprep.subr.mxu0 0.0
    %765 = vmatpush1.msra.mxu0 0.0
    %766 = vmatprep.subr.mxu0 0.0
    %767 = vmatpush1.msra.mxu0 0.0
    %768 = vmatprep.subr.mxu0 0.0
    %769 = vmatpush1.msra.mxu0 0.0
    %770 = vmatprep.subr.mxu0 0.0
    %771 = vmatpush1.msra.mxu0 0.0
    %772 = vmatprep.subr.mxu0 0.0
    %773 = vmatpush1.msra.mxu0 0.0
    %774 = vmatprep.subr.mxu0 0.0
    %775 = vmatpush1.msra.mxu0 0.0
    %776 = vmatprep.subr.mxu0 0.0
    %777 = vmatpush1.msra.mxu0 0.0
    %778 = vmatprep.mubr.f32.mxu0 0.0
    %779 = vmatmul.mubr.f32.gmra.mrb[0].mxu0 %v709
    %v780 = vpop.f32.mrb[0].mxu0
    %v781 = vadd.f32 0.0, %v780
    %v782 = vpop.f32.mrb[0].mxu0
    %783 = vmatprep.mubr.f32.mxu0 0.0
    %784 = vmatmul.mubr.f32.gmra.mrb[0].mxu0 %v712
    %v785 = vpop.f32.mrb[0].mxu0
    %v786 = vadd.f32 0.0, %v785
    %v787 = vpop.f32.mrb[0].mxu0
    %788 = vdwg.mxu0
    %789 = vrot.lane.b32.xlu0 %v168, 64
    %v790 = vpop.permute.xlu0 %789
    %791 = vrot.lane.b32.xlu0 %v170, 64
    %v792 = vpop.permute.xlu0 %791
    %v796 = vsel %vm526, %v611, 0
    %v799 = vsel %vm526, %v612, 0
    %801 = vmatprep.subr.mxu0 0.0
    %802 = vmatpush1.msra.mxu0 %v790
    %803 = vmatprep.subr.mxu0 0.0
    %804 = vmatpush1.msra.mxu0 %v792
    %805 = vmatprep.subr.mxu0 0.0
    %806 = vmatpush1.msra.mxu0 0.0
    %807 = vmatprep.subr.mxu0 0.0
    %808 = vmatpush1.msra.mxu0 0.0
    %809 = vmatprep.subr.mxu0 0.0
    %810 = vmatpush1.msra.mxu0 0.0
    %811 = vmatprep.subr.mxu0 0.0
    %812 = vmatpush1.msra.mxu0 0.0
    %813 = vmatprep.subr.mxu0 0.0
    %814 = vmatpush1.msra.mxu0 0.0
    %815 = vmatprep.subr.mxu0 0.0
    %816 = vmatpush1.msra.mxu0 0.0
    %817 = vmatprep.subr.mxu0 0.0
    %818 = vmatpush1.msra.mxu0 0.0
    %819 = vmatprep.subr.mxu0 0.0
    %820 = vmatpush1.msra.mxu0 0.0
    %821 = vmatprep.subr.mxu0 0.0
    %822 = vmatpush1.msra.mxu0 0.0
    %823 = vmatprep.subr.mxu0 0.0
    %824 = vmatpush1.msra.mxu0 0.0
    %825 = vmatprep.subr.mxu0 0.0
    %826 = vmatpush1.msra.mxu0 0.0
    %827 = vmatprep.subr.mxu0 0.0
    %828 = vmatpush1.msra.mxu0 0.0
    %829 = vmatprep.subr.mxu0 0.0
    %830 = vmatpush1.msra.mxu0 0.0
    %831 = vmatprep.subr.mxu0 0.0
    %832 = vmatpush1.msra.mxu0 0.0
    %833 = vmatprep.subr.mxu0 0.0
    %834 = vmatpush1.msra.mxu0 0.0
    %835 = vmatprep.subr.mxu0 0.0
    %836 = vmatpush1.msra.mxu0 0.0
    %837 = vmatprep.subr.mxu0 0.0
    %838 = vmatpush1.msra.mxu0 0.0
    %839 = vmatprep.subr.mxu0 0.0
    %840 = vmatpush1.msra.mxu0 0.0
    %841 = vmatprep.subr.mxu0 0.0
    %842 = vmatpush1.msra.mxu0 0.0
    %843 = vmatprep.subr.mxu0 0.0
    %844 = vmatpush1.msra.mxu0 0.0
    %845 = vmatprep.subr.mxu0 0.0
    %846 = vmatpush1.msra.mxu0 0.0
    %847 = vmatprep.subr.mxu0 0.0
    %848 = vmatpush1.msra.mxu0 0.0
    %849 = vmatprep.subr.mxu0 0.0
    %850 = vmatpush1.msra.mxu0 0.0
    %851 = vmatprep.subr.mxu0 0.0
    %852 = vmatpush1.msra.mxu0 0.0
    %853 = vmatprep.subr.mxu0 0.0
    %854 = vmatpush1.msra.mxu0 0.0
    %855 = vmatprep.subr.mxu0 0.0
    %856 = vmatpush1.msra.mxu0 0.0
    %857 = vmatprep.subr.mxu0 0.0
    %858 = vmatpush1.msra.mxu0 0.0
    %859 = vmatprep.subr.mxu0 0.0
    %860 = vmatpush1.msra.mxu0 0.0
    %861 = vmatprep.subr.mxu0 0.0
    %862 = vmatpush1.msra.mxu0 0.0
    %863 = vmatprep.subr.mxu0 0.0
    %864 = vmatpush1.msra.mxu0 0.0
    %865 = vmatprep.mubr.f32.mxu0 0.0
    %866 = vmatmul.mubr.f32.gmra.mrb[0].mxu0 %v796
    %v867 = vpop.f32.mrb[0].mxu0
    %v868 = vadd.f32 0.0, %v867
    %v869 = vpop.f32.mrb[0].mxu0
    %870 = vmatprep.mubr.f32.mxu0 0.0
    %871 = vmatmul.mubr.f32.gmra.mrb[0].mxu0 %v799
    %v872 = vpop.f32.mrb[0].mxu0
    %v873 = vadd.f32 0.0, %v872
    %v874 = vpop.f32.mrb[0].mxu0
    %875 = vdwg.mxu0
    %876 = vrot.lane.b32.xlu0 %v172, 64
    %v877 = vpop.permute.xlu0 %876
    %878 = vrot.lane.b32.xlu0 %v174, 64
    %v879 = vpop.permute.xlu0 %878
    %v883 = vsel %vm526, %v613, 0
    %v886 = vsel %vm526, %v614, 0
    %888 = vmatprep.subr.mxu0 0.0
    %889 = vmatpush1.msra.mxu0 %v877
    %890 = vmatprep.subr.mxu0 0.0
    %891 = vmatpush1.msra.mxu0 %v879
    %892 = vmatprep.subr.mxu0 0.0
    %893 = vmatpush1.msra.mxu0 0.0
    %894 = vmatprep.subr.mxu0 0.0
    %895 = vmatpush1.msra.mxu0 0.0
    %896 = vmatprep.subr.mxu0 0.0
    %897 = vmatpush1.msra.mxu0 0.0
    %898 = vmatprep.subr.mxu0 0.0
    %899 = vmatpush1.msra.mxu0 0.0
    %900 = vmatprep.subr.mxu0 0.0
    %901 = vmatpush1.msra.mxu0 0.0
    %902 = vmatprep.subr.mxu0 0.0
    %903 = vmatpush1.msra.mxu0 0.0
    %904 = vmatprep.subr.mxu0 0.0
    %905 = vmatpush1.msra.mxu0 0.0
    %906 = vmatprep.subr.mxu0 0.0
    %907 = vmatpush1.msra.mxu0 0.0
    %908 = vmatprep.subr.mxu0 0.0
    %909 = vmatpush1.msra.mxu0 0.0
    %910 = vmatprep.subr.mxu0 0.0
    %911 = vmatpush1.msra.mxu0 0.0
    %912 = vmatprep.subr.mxu0 0.0
    %913 = vmatpush1.msra.mxu0 0.0
    %914 = vmatprep.subr.mxu0 0.0
    %915 = vmatpush1.msra.mxu0 0.0
    %916 = vmatprep.subr.mxu0 0.0
    %917 = vmatpush1.msra.mxu0 0.0
    %918 = vmatprep.subr.mxu0 0.0
    %919 = vmatpush1.msra.mxu0 0.0
    %920 = vmatprep.subr.mxu0 0.0
    %921 = vmatpush1.msra.mxu0 0.0
    %922 = vmatprep.subr.mxu0 0.0
    %923 = vmatpush1.msra.mxu0 0.0
    %924 = vmatprep.subr.mxu0 0.0
    %925 = vmatpush1.msra.mxu0 0.0
    %926 = vmatprep.subr.mxu0 0.0
    %927 = vmatpush1.msra.mxu0 0.0
    %928 = vmatprep.subr.mxu0 0.0
    %929 = vmatpush1.msra.mxu0 0.0
    %930 = vmatprep.subr.mxu0 0.0
    %931 = vmatpush1.msra.mxu0 0.0
    %932 = vmatprep.subr.mxu0 0.0
    %933 = vmatpush1.msra.mxu0 0.0
    %934 = vmatprep.subr.mxu0 0.0
    %935 = vmatpush1.msra.mxu0 0.0
    %936 = vmatprep.subr.mxu0 0.0
    %937 = vmatpush1.msra.mxu0 0.0
    %938 = vmatprep.subr.mxu0 0.0
    %939 = vmatpush1.msra.mxu0 0.0
    %940 = vmatprep.subr.mxu0 0.0
    %941 = vmatpush1.msra.mxu0 0.0
    %942 = vmatprep.subr.mxu0 0.0
    %943 = vmatpush1.msra.mxu0 0.0
    %944 = vmatprep.subr.mxu0 0.0
    %945 = vmatpush1.msra.mxu0 0.0
    %946 = vmatprep.subr.mxu0 0.0
    %947 = vmatpush1.msra.mxu0 0.0
    %948 = vmatprep.subr.mxu0 0.0
    %949 = vmatpush1.msra.mxu0 0.0
    %950 = vmatprep.subr.mxu0 0.0
    %951 = vmatpush1.msra.mxu0 0.0
    %952 = vmatprep.mubr.f32.mxu0 0.0
    %953 = vmatmul.mubr.f32.gmra.mrb[0].mxu0 %v883
    %v954 = vpop.f32.mrb[0].mxu0
    %v955 = vadd.f32 0.0, %v954
    %v956 = vpop.f32.mrb[0].mxu0
    %957 = vmatprep.mubr.f32.mxu0 0.0
    %958 = vmatmul.mubr.f32.gmra.mrb[0].mxu0 %v886
    %v959 = vpop.f32.mrb[0].mxu0
    %v960 = vadd.f32 0.0, %v959
    %v961 = vpop.f32.mrb[0].mxu0
    %962 = vdwg.mxu0
    %965 = vrot.lane.b32.xlu0 %v781, 8
    %v966 = vpop.permute.xlu0 %965
    %967 = vrot.lane.b32.xlu0 %v786, 8
    %v968 = vpop.permute.xlu0 %967
    %973 = vrot.lane.b32.xlu0 %v868, 16
    %v974 = vpop.permute.xlu0 %973
    %975 = vrot.lane.b32.xlu0 %v873, 16
    %v976 = vpop.permute.xlu0 %975
    %981 = vrot.lane.b32.xlu0 %v955, 24
    %v982 = vpop.permute.xlu0 %981
    %983 = vrot.lane.b32.xlu0 %v960, 24
    %v984 = vpop.permute.xlu0 %983
    %v987 = vsel %vm181, %v694, %v966
    %v988 = vsel %vm181, %v699, %v968
    %v989 = vsel %vm526, %v987, %v974
    %v990 = vsel %vm526, %v988, %v976
    %vm991 = vcmask 195584
    %v992 = vsel %vm991, %v989, %v982
    %v993 = vsel %vm991, %v990, %v984
    %v994 = vld [vmem:[#allocation7] sm:$0xff]
    %v995 = vld [vmem:[#allocation7 + $0x8] sm:$0xff]
    %v996 = vld [vmem:[#allocation7 + $0x10] sm:$0xff]
    %v997 = vld [vmem:[#allocation7 + $0x18] sm:$0xff]
    %v999 = vsel %vm79, %v992, 0
    %v1002 = vsel %vm79, %v993, 0
    %1004 = vmatprep.subr.mxu0 0.0
    %1005 = vmatpush1.msra.mxu0 %v994
    %1006 = vmatprep.subr.mxu0 0.0
    %1007 = vmatpush1.msra.mxu0 %v995
    %1008 = vmatprep.subr.mxu0 0.0
    %1009 = vmatpush1.msra.mxu0 %v996
    %1010 = vmatprep.subr.mxu0 0.0
    %1011 = vmatpush1.msra.mxu0 %v997
    %1012 = vmatprep.subr.mxu0 0.0
    %1013 = vmatpush1.msra.mxu0 0.0
    %1014 = vmatprep.subr.mxu0 0.0
    %1015 = vmatpush1.msra.mxu0 0.0
    %1016 = vmatprep.subr.mxu0 0.0
    %1017 = vmatpush1.msra.mxu0 0.0
    %1018 = vmatprep.subr.mxu0 0.0
    %1019 = vmatpush1.msra.mxu0 0.0
    %1020 = vmatprep.subr.mxu0 0.0
    %1021 = vmatpush1.msra.mxu0 0.0
    %1022 = vmatprep.subr.mxu0 0.0
    %1023 = vmatpush1.msra.mxu0 0.0
    %1024 = vmatprep.subr.mxu0 0.0
    %1025 = vmatpush1.msra.mxu0 0.0
    %1026 = vmatprep.subr.mxu0 0.0
    %1027 = vmatpush1.msra.mxu0 0.0
    %1028 = vmatprep.subr.mxu0 0.0
    %1029 = vmatpush1.msra.mxu0 0.0
    %1030 = vmatprep.subr.mxu0 0.0
    %1031 = vmatpush1.msra.mxu0 0.0
    %1032 = vmatprep.subr.mxu0 0.0
    %1033 = vmatpush1.msra.mxu0 0.0
    %1034 = vmatprep.subr.mxu0 0.0
    %1035 = vmatpush1.msra.mxu0 0.0
    %1036 = vmatprep.subr.mxu0 0.0
    %1037 = vmatpush1.msra.mxu0 0.0
    %1038 = vmatprep.subr.mxu0 0.0
    %1039 = vmatpush1.msra.mxu0 0.0
    %1040 = vmatprep.subr.mxu0 0.0
    %1041 = vmatpush1.msra.mxu0 0.0
    %1042 = vmatprep.subr.mxu0 0.0
    %1043 = vmatpush1.msra.mxu0 0.0
    %1044 = vmatprep.subr.mxu0 0.0
    %1045 = vmatpush1.msra.mxu0 0.0
    %1046 = vmatprep.subr.mxu0 0.0
    %1047 = vmatpush1.msra.mxu0 0.0
    %1048 = vmatprep.subr.mxu0 0.0
    %1049 = vmatpush1.msra.mxu0 0.0
    %1050 = vmatprep.subr.mxu0 0.0
    %1051 = vmatpush1.msra.mxu0 0.0
    %1052 = vmatprep.subr.mxu0 0.0
    %1053 = vmatpush1.msra.mxu0 0.0
    %1054 = vmatprep.subr.mxu0 0.0
    %1055 = vmatpush1.msra.mxu0 0.0
    %1056 = vmatprep.subr.mxu0 0.0
    %1057 = vmatpush1.msra.mxu0 0.0
    %1058 = vmatprep.subr.mxu0 0.0
    %1059 = vmatpush1.msra.mxu0 0.0
    %1060 = vmatprep.subr.mxu0 0.0
    %1061 = vmatpush1.msra.mxu0 0.0
    %1062 = vmatprep.subr.mxu0 0.0
    %1063 = vmatpush1.msra.mxu0 0.0
    %1064 = vmatprep.subr.mxu0 0.0
    %1065 = vmatpush1.msra.mxu0 0.0
    %1066 = vmatprep.subr.mxu0 0.0
    %1067 = vmatpush1.msra.mxu0 0.0
    %1068 = vmatprep.mubr.f32.mxu0 0.0
    %1069 = vmatmul.mubr.f32.gmra.mrb[0].mxu0 %v999
    %v1070 = vpop.f32.mrb[0].mxu0
    %v1071 = vadd.f32 0.0, %v1070
    %v1072 = vpop.f32.mrb[0].mxu0
    %1073 = vmatprep.mubr.f32.mxu0 0.0
    %1074 = vmatmul.mubr.f32.gmra.mrb[0].mxu0 %v1002
    %v1075 = vpop.f32.mrb[0].mxu0
    %v1076 = vadd.f32 0.0, %v1075
    %v1077 = vpop.f32.mrb[0].mxu0
    %1078 = vdwg.mxu0
    %1079 = vst.msk [vmem:[#allocation10] sm:$0xff] %vm79, %v1071
    %1080 = vst.msk [vmem:[#allocation10 + $0x8] sm:$0xff] %vm79, %v1076
    // Predicated region
    $region34: #{tpu_custom_call.1} parent=1 // pred_check
      _
    $region35: #{tpu_custom_call.1} parent=1 // pred_check_branch
      %1082 = sbr.rel (0) target = $region37
    $region36: #{tpu_custom_call.1} parent=1 // pred_region
      %s1084 = ssub.s32 256, 256
      %1085 = vsyncadd [#allocation4], %s1084
      %s1086 = sshll.u32 [#allocation10], 4
      %s1087 = int_to_ptr.vmem [resolvable:$true] %s1086
      %1092 = dma.vmem_to_hbm [thread:$0]  %s1087, 256, %s4, [#allocation4], 128, 128, 8
    $region37: #{tpu_custom_call.1} parent=1 // pred_fallthru
      _
    // Predicated region
    $region38: #{tpu_custom_call.1} parent=1 // pred_check
      _
    $region39: #{tpu_custom_call.1} parent=1 // pred_check_branch
      %1094 = sbr.rel (0) target = $region41
    $region40: #{tpu_custom_call.1} parent=1 // pred_region
      %1095 = dma.done [#allocation4], 256
    $region41: #{tpu_custom_call.1} parent=1 // pred_fallthru
      _
    %1096 = vsyncpa [#allocation3], 1
    %1097 = vsyncpa [#allocation6], 1
    %1098 = vsyncpa [#allocation9], 1
    %1099 = vsyncpa [#allocation4], 1

</llo_original>
